<compile_context>
chip_gen: v7x
topology: tpu7x:2x2x1
jax: 0.10.0
libtpu: 0.0.40
codegen_flags: <defaults>
</compile_context>

<pallas_src>
import functools

import jax
import jax.numpy as jnp
import numpy as np
from jax.experimental import pallas as pl
from jax.experimental.pallas import tpu as pltpu


def _rnncell_kernel(x_ref, h_ref, c_ref, w_ref, b_ref, h_out_ref, c_out_ref,
                    conc_ref, imcol_ref, *, H, W, Cin, CH, CP):
    """Fused ConvLSTM cell (one batch element per grid step).

    x_ref     : (1, Cin, H*W)  f32 input activations, pixels on lanes
    h_ref     : (1, CH,  H*W)  f32 previous hidden state
    c_ref     : (1, CH,  H*W)  f32 previous cell state
    w_ref     : (4*CH, 9*CP)   bf16 fused conv weights, col = tap*CP + in_ch
    b_ref     : (4*CH, 1)      f32 gate biases
    h_out_ref : (1, CH, H*W)   f32 (aliased with h_ref's buffer)
    c_out_ref : (1, CH, H*W)   f32 (aliased with c_ref's buffer)
    conc_ref  : VMEM (CP, H*W)   bf16 scratch: [x; h; zero-pad] channel rows
    imcol_ref : VMEM (9*CP, H*W) bf16 scratch: transposed im2col matrix
    """
    HW = H * W
    C = Cin + CH

    # ---- assemble concat([x, h]) channel-major (pixels on lanes), bf16 ------
    conc_ref[0:Cin, :] = x_ref[0].astype(jnp.bfloat16)
    conc_ref[Cin:C, :] = h_ref[0].astype(jnp.bfloat16)
    if CP > C:
        conc_ref[C:CP, :] = jnp.zeros((CP - C, HW), jnp.bfloat16)
    conc = conc_ref[...]                                   # (CP, HW) bf16

    # ---- build im2col^T: rows [t*CP + c] = channel c shifted by tap t -------
    # Zero halo handled by (a) restricting the shifted lane-slice range
    # (vertical out-of-bounds) and (b) a per-tap x-boundary mask (horizontal),
    # on top of a zero-initialized scratch.
    imcol_ref[...] = jnp.zeros_like(imcol_ref)
    for ky in range(3):
        for kx in range(3):
            dy, dx = ky - 1, kx - 1
            s = dy * W + dx                     # flat pixel shift of this tap
            t = ky * 3 + kx
            dst_lo, dst_hi = max(0, -s), min(HW, HW - s)
            width = dst_hi - dst_lo
            sl = conc[:, dst_lo + s:dst_hi + s]            # (CP, width)
            if dx == 0:
                piece = sl
            else:
                xpos = (jax.lax.broadcasted_iota(jnp.int32, (1, width), 1)
                        + dst_lo) % W
                ok = (xpos + dx >= 0) & (xpos + dx < W)
                piece = jnp.where(ok, sl, jnp.zeros_like(sl))
            imcol_ref[t * CP:(t + 1) * CP, dst_lo:dst_hi] = piece

    # ---- all four gates in a single MXU matmul (bf16 x bf16 -> f32) ---------
    gates = jnp.dot(w_ref[...], imcol_ref[...],
                    preferred_element_type=jnp.float32)     # (4*CH, HW) f32
    gates = gates + b_ref[...]                              # (4*CH, 1) bcast

    i_g = jax.nn.sigmoid(gates[0 * CH:1 * CH, :])
    f_g = jax.nn.sigmoid(gates[1 * CH:2 * CH, :])
    o_g = jax.nn.sigmoid(gates[2 * CH:3 * CH, :])
    c_g = jnp.tanh(gates[3 * CH:4 * CH, :])

    c_old = c_ref[0]                                        # (CH, HW) f32
    c_new = f_g * c_old + i_g * c_g
    h_new = o_g * jnp.tanh(c_new)

    h_out_ref[0] = h_new
    c_out_ref[0] = c_new


def pack_rnncell_params(weights, biases):
    """(4, CH, C, 3, 3) OIHW gate weights -> (4*CH, 9*CP) bf16 fused matrix.

    Column order is tap-major / in-channel-minor, channels zero-padded to a
    multiple of 16 so every tap block is a full bf16 sublane tile.  In the
    real recurrent loop this packing is done once, outside the time loop.
    """
    G, CH, C, KH, KW = weights.shape
    assert (G, KH, KW) == (4, 3, 3)
    CP = ((C + 15) // 16) * 16
    wt = jnp.transpose(weights, (0, 1, 3, 4, 2))            # (g, o, ky, kx, c)
    wt = wt.reshape(G * CH, KH * KW, C)
    wt = jnp.pad(wt, ((0, 0), (0, 0), (0, CP - C)))
    w2 = wt.reshape(G * CH, KH * KW * CP).astype(jnp.bfloat16)
    b2 = biases.reshape(G * CH, 1).astype(jnp.float32)
    return w2, b2


def rnncell_forward_packed(x_p, h_p, c_p, w2, b2, *, H, W):
    """Packed-layout forward: x_p (N,Cin,H*W), h_p/c_p (N,CH,H*W) f32."""
    N, Cin, HW = x_p.shape
    CH = h_p.shape[1]
    CP = w2.shape[1] // 9
    assert HW == H * W

    kernel = functools.partial(_rnncell_kernel,
                               H=H, W=W, Cin=Cin, CH=CH, CP=CP)
    out_shape = (jax.ShapeDtypeStruct((N, CH, HW), jnp.float32),
                 jax.ShapeDtypeStruct((N, CH, HW), jnp.float32))

    h_new, c_new = pl.pallas_call(
        kernel,
        out_shape=out_shape,
        grid=(N,),
        in_specs=[
            pl.BlockSpec((1, Cin, HW), lambda n: (n, 0, 0)),
            pl.BlockSpec((1, CH, HW), lambda n: (n, 0, 0)),
            pl.BlockSpec((1, CH, HW), lambda n: (n, 0, 0)),
            pl.BlockSpec((4 * CH, 9 * CP), lambda n: (0, 0)),  # weights: resident
            pl.BlockSpec((4 * CH, 1), lambda n: (0, 0)),       # bias: resident
        ],
        out_specs=(
            pl.BlockSpec((1, CH, HW), lambda n: (n, 0, 0)),
            pl.BlockSpec((1, CH, HW), lambda n: (n, 0, 0)),
        ),
        scratch_shapes=[
            pltpu.VMEM((CP, HW), jnp.bfloat16),          # concat([x, h]) rows
            pltpu.VMEM((9 * CP, HW), jnp.bfloat16),      # im2col^T
        ],
        # In-place recurrent state update: h -> h_out, c -> c_out.
        input_output_aliases={1: 0, 2: 1},
        compiler_params=pltpu.CompilerParams(
            dimension_semantics=("parallel",)),
    )(x_p, h_p, c_p, w2, b2)
    return h_new, c_new


@jax.jit
def rnncell_forward(x_nchw, h_nchw, c_nchw, weights, biases):
    """NCHW adapter (for parity with the PyTorch module / reference).

    The packed layout is a pure reshape of NCHW (no transposes).  In the real
    set_values time loop h/c would stay in the packed layout across steps and
    the params would be packed once up front.
    """
    N, Cin, H, W = x_nchw.shape
    CH = h_nchw.shape[1]
    w2, b2 = pack_rnncell_params(weights, biases)
    x_p = x_nchw.reshape(N, Cin, H * W)
    h_p = h_nchw.reshape(N, CH, H * W)
    c_p = c_nchw.reshape(N, CH, H * W)
    h_new, c_new = rnncell_forward_packed(x_p, h_p, c_p, w2, b2, H=H, W=W)
    return h_new.reshape(N, CH, H, W), c_new.reshape(N, CH, H, W)


def reference_forward(x, h, c, weights, biases):
    """Pure-JAX f32 reference (same semantics as the PyTorch RNNCell)."""
    conc = jnp.concatenate([x, h], axis=1)
    outs = []
    for g in range(4):
        o = jax.lax.conv_general_dilated(
            conc, weights[g], window_strides=(1, 1),
            padding=((1, 1), (1, 1)),
            dimension_numbers=("NCHW", "OIHW", "NCHW"))
        outs.append(o + biases[g][None, :, None, None])
    i_g = jax.nn.sigmoid(outs[0])
    f_g = jax.nn.sigmoid(outs[1])
    o_g = jax.nn.sigmoid(outs[2])
    c_g = jnp.tanh(outs[3])
    c_new = f_g * c + i_g * c_g
    h_new = o_g * jnp.tanh(c_new)
    return h_new, c_new


if __name__ == "__main__":
    # Small shapes consistent with the recurrent cell: batch=2, input ch=4,
    # hidden ch=8, 16x16 spatial (W*CH = 128, H*W = 256).
    N, Cin, CH, H, W = 2, 4, 8, 16, 16
    C = Cin + CH

    key = jax.random.PRNGKey(0)
    kkx, kkh, kkc, kkw, kkb = jax.random.split(key, 5)

    x = jax.random.normal(kkx, (N, Cin, H, W), jnp.float32)
    h0 = jax.random.normal(kkh, (N, CH, H, W), jnp.float32)
    c0 = jax.random.normal(kkc, (N, CH, H, W), jnp.float32)

    # Conv2d-like uniform init with bound 1/sqrt(fan_in).
    fan_in = C * 3 * 3
    bound = 1.0 / np.sqrt(fan_in)
    weights = jax.random.uniform(kkw, (4, CH, C, 3, 3), jnp.float32,
                                 minval=-bound, maxval=bound)
    biases = jax.random.uniform(kkb, (4, CH), jnp.float32,
                                minval=-bound, maxval=bound)

    # Reference first (pure f32 XLA conv), then the Pallas kernel.
    h_gold, c_gold = reference_forward(x, h0, c0, weights, biases)
    jax.block_until_ready((h_gold, c_gold))

    h_new, c_new = rnncell_forward(x, h0, c0, weights, biases)
    jax.block_until_ready((h_new, c_new))

    # bf16 MXU operands -> slightly looser tolerance than pure f32.
    np.testing.assert_allclose(np.asarray(h_new), np.asarray(h_gold),
                               rtol=2e-2, atol=2e-2)
    np.testing.assert_allclose(np.asarray(c_new), np.asarray(c_gold),
                               rtol=2e-2, atol=2e-2)

    print("KERNEL_OK")
</pallas_src>

<mosaic_0001>
module attributes {stable_mosaic.version = 11 : i64} {
  func.func @_rnncell_kernel(%arg0: i32, %arg1: memref<1x4x256xf32, #tpu.memory_space<vmem>>, %arg2: memref<1x8x256xf32, #tpu.memory_space<vmem>>, %arg3: memref<1x8x256xf32, #tpu.memory_space<vmem>>, %arg4: memref<32x144xbf16, #tpu.memory_space<vmem>>, %arg5: memref<32x1xf32, #tpu.memory_space<vmem>>, %arg6: memref<1x8x256xf32, #tpu.memory_space<vmem>>, %arg7: memref<1x8x256xf32, #tpu.memory_space<vmem>>, %arg8: memref<16x256xbf16, #tpu.memory_space<vmem>>, %arg9: memref<144x256xbf16, #tpu.memory_space<vmem>>) attributes {dimension_semantics = [#tpu.dimension_semantics<parallel>], iteration_bounds = array<i64: 2>, scalar_prefetch = 0 : i64, scratch_operands = 2 : i64, tpu.core_type = #tpu.core_type<tc>, window_params = [{transform_indices = @transform_0, window_bounds = array<i64: 1, 4, 256>}, {transform_indices = @transform_1, window_bounds = array<i64: 1, 8, 256>}, {transform_indices = @transform_2, window_bounds = array<i64: 1, 8, 256>}, {pipeline_mode = #tpu.pipeline_mode<synchronous>, transform_indices = @transform_3, window_bounds = array<i64: 32, 144>}, {pipeline_mode = #tpu.pipeline_mode<synchronous>, transform_indices = @transform_4, window_bounds = array<i64: 32, 1>}, {transform_indices = @transform_5, window_bounds = array<i64: 1, 8, 256>}, {transform_indices = @transform_6, window_bounds = array<i64: 1, 8, 256>}]} {
    %c0 = arith.constant 0 : index
    %c0_0 = arith.constant 0 : index
    %c0_1 = arith.constant 0 : index
    %0 = vector.load %arg1[%c0, %c0_0, %c0_1] : memref<1x4x256xf32, #tpu.memory_space<vmem>>, vector<1x4x256xf32>
    %1 = vector.shape_cast %0 : vector<1x4x256xf32> to vector<4x256xf32>
    %2 = arith.truncf %1 : vector<4x256xf32> to vector<4x256xbf16>
    %c0_2 = arith.constant 0 : index
    %c0_3 = arith.constant 0 : index
    %3 = vector.load %arg8[%c0_2, %c0_3] : memref<16x256xbf16, #tpu.memory_space<vmem>>, vector<4x256xbf16>
    tpu.vector_store %arg8[%c0_2, %c0_3], %2 {strides = array<i32>} : memref<16x256xbf16, #tpu.memory_space<vmem>>, vector<4x256xbf16>,
    %c0_4 = arith.constant 0 : index
    %c0_5 = arith.constant 0 : index
    %c0_6 = arith.constant 0 : index
    %4 = vector.load %arg2[%c0_4, %c0_5, %c0_6] : memref<1x8x256xf32, #tpu.memory_space<vmem>>, vector<1x8x256xf32>
    %5 = vector.shape_cast %4 : vector<1x8x256xf32> to vector<8x256xf32>
    %6 = arith.truncf %5 : vector<8x256xf32> to vector<8x256xbf16>
    %c4 = arith.constant 4 : index
    %c0_7 = arith.constant 0 : index
    %7 = vector.load %arg8[%c4, %c0_7] : memref<16x256xbf16, #tpu.memory_space<vmem>>, vector<8x256xbf16>
    tpu.vector_store %arg8[%c4, %c0_7], %6 {strides = array<i32>} : memref<16x256xbf16, #tpu.memory_space<vmem>>, vector<8x256xbf16>,
    %cst = arith.constant 0.000000e+00 : bf16
    %8 = vector.broadcast %cst : bf16 to vector<4x256xbf16>
    %c12 = arith.constant 12 : index
    %c0_8 = arith.constant 0 : index
    %9 = vector.load %arg8[%c12, %c0_8] : memref<16x256xbf16, #tpu.memory_space<vmem>>, vector<4x256xbf16>
    tpu.vector_store %arg8[%c12, %c0_8], %8 {strides = array<i32>} : memref<16x256xbf16, #tpu.memory_space<vmem>>, vector<4x256xbf16>,
    %c0_9 = arith.constant 0 : index
    %c0_10 = arith.constant 0 : index
    %10 = vector.load %arg8[%c0_9, %c0_10] : memref<16x256xbf16, #tpu.memory_space<vmem>>, vector<16x256xbf16>
    %cst_11 = arith.constant 0.000000e+00 : bf16
    %11 = vector.broadcast %cst_11 : bf16 to vector<144x256xbf16>
    %c0_12 = arith.constant 0 : index
    %c0_13 = arith.constant 0 : index
    %12 = vector.load %arg9[%c0_12, %c0_13] : memref<144x256xbf16, #tpu.memory_space<vmem>>, vector<144x256xbf16>
    tpu.vector_store %arg9[%c0_12, %c0_13], %11 {strides = array<i32>} : memref<144x256xbf16, #tpu.memory_space<vmem>>, vector<144x256xbf16>,
    %13 = vector.extract_strided_slice %10 {offsets = [0, 0], sizes = [16, 239], strides = [1, 1]} : vector<16x256xbf16> to vector<16x239xbf16>
    %14 = tpu.iota {dimensions = array<i32: 1>} : vector<1x239xi32>
    %c17_i32 = arith.constant 17 : i32
    %15 = vector.broadcast %c17_i32 : i32 to vector<1x239xi32>
    %16 = arith.addi %14, %15 : vector<1x239xi32>
    %c16_i32 = arith.constant 16 : i32
    %c0_i32 = arith.constant 0 : i32
    %17 = arith.cmpi eq, %c16_i32, %c0_i32 : i32
    %c1_i32 = arith.constant 1 : i32
    %18 = arith.select %17, %c1_i32, %c16_i32 : i32
    %19 = vector.broadcast %18 : i32 to vector<1x239xi32>
    %20 = arith.remsi %16, %19 : vector<1x239xi32>
    %c0_i32_14 = arith.constant 0 : i32
    %21 = vector.broadcast %c0_i32_14 : i32 to vector<1x239xi32>
    %22 = arith.cmpi ne, %20, %21 : vector<1x239xi32>
    %c0_i32_15 = arith.constant 0 : i32
    %23 = vector.broadcast %c0_i32_15 : i32 to vector<1x239xi32>
    %24 = arith.cmpi slt, %20, %23 : vector<1x239xi32>
    %c0_i32_16 = arith.constant 0 : i32
    %25 = arith.cmpi slt, %18, %c0_i32_16 : i32
    %26 = vector.broadcast %25 : i1 to vector<1x239xi1>
    %27 = vector.broadcast %26 : vector<1x239xi1> to vector<1x239xi1>
    %28 = arith.xori %24, %27 : vector<1x239xi1>
    %29 = arith.andi %28, %22 : vector<1x239xi1>
    %30 = vector.broadcast %18 : i32 to vector<1x239xi32>
    %31 = arith.addi %20, %30 : vector<1x239xi32>
    %32 = arith.select %29, %31, %20 : vector<1x239xi1>, vector<1x239xi32>
    %c-1_i32 = arith.constant -1 : i32
    %33 = vector.broadcast %c-1_i32 : i32 to vector<1x239xi32>
    %34 = arith.addi %32, %33 : vector<1x239xi32>
    %c0_i32_17 = arith.constant 0 : i32
    %35 = vector.broadcast %c0_i32_17 : i32 to vector<1x239xi32>
    %36 = arith.cmpi sge, %34, %35 : vector<1x239xi32>
    %c-1_i32_18 = arith.constant -1 : i32
    %37 = vector.broadcast %c-1_i32_18 : i32 to vector<1x239xi32>
    %38 = arith.addi %32, %37 : vector<1x239xi32>
    %c16_i32_19 = arith.constant 16 : i32
    %39 = vector.broadcast %c16_i32_19 : i32 to vector<1x239xi32>
    %40 = arith.cmpi slt, %38, %39 : vector<1x239xi32>
    %41 = arith.andi %36, %40 : vector<1x239xi1>
    %cst_20 = arith.constant 0.000000e+00 : bf16
    %42 = vector.broadcast %cst_20 : bf16 to vector<16x239xbf16>
    %43 = vector.shape_cast %41 : vector<1x239xi1> to vector<1x239xi1>
    %44 = vector.broadcast %43 : vector<1x239xi1> to vector<16x239xi1>
    %45 = arith.select %44, %13, %42 : vector<16x239xi1>, vector<16x239xbf16>
    %c0_21 = arith.constant 0 : index
    %c17 = arith.constant 17 : index
    %46 = vector.load %arg9[%c0_21, %c17] : memref<144x256xbf16, #tpu.memory_space<vmem>>, vector<16x239xbf16>
    tpu.vector_store %arg9[%c0_21, %c17], %45 {strides = array<i32>} : memref<144x256xbf16, #tpu.memory_space<vmem>>, vector<16x239xbf16>,
    %47 = vector.extract_strided_slice %10 {offsets = [0, 0], sizes = [16, 240], strides = [1, 1]} : vector<16x256xbf16> to vector<16x240xbf16>
    %c16 = arith.constant 16 : index
    %c16_22 = arith.constant 16 : index
    %48 = vector.load %arg9[%c16, %c16_22] : memref<144x256xbf16, #tpu.memory_space<vmem>>, vector<16x240xbf16>
    tpu.vector_store %arg9[%c16, %c16_22], %47 {strides = array<i32>} : memref<144x256xbf16, #tpu.memory_space<vmem>>, vector<16x240xbf16>,
    %49 = vector.extract_strided_slice %10 {offsets = [0, 0], sizes = [16, 241], strides = [1, 1]} : vector<16x256xbf16> to vector<16x241xbf16>
    %50 = tpu.iota {dimensions = array<i32: 1>} : vector<1x241xi32>
    %c15_i32 = arith.constant 15 : i32
    %51 = vector.broadcast %c15_i32 : i32 to vector<1x241xi32>
    %52 = arith.addi %50, %51 : vector<1x241xi32>
    %c16_i32_23 = arith.constant 16 : i32
    %c0_i32_24 = arith.constant 0 : i32
    %53 = arith.cmpi eq, %c16_i32_23, %c0_i32_24 : i32
    %c1_i32_25 = arith.constant 1 : i32
    %54 = arith.select %53, %c1_i32_25, %c16_i32_23 : i32
    %55 = vector.broadcast %54 : i32 to vector<1x241xi32>
    %56 = arith.remsi %52, %55 : vector<1x241xi32>
    %c0_i32_26 = arith.constant 0 : i32
    %57 = vector.broadcast %c0_i32_26 : i32 to vector<1x241xi32>
    %58 = arith.cmpi ne, %56, %57 : vector<1x241xi32>
    %c0_i32_27 = arith.constant 0 : i32
    %59 = vector.broadcast %c0_i32_27 : i32 to vector<1x241xi32>
    %60 = arith.cmpi slt, %56, %59 : vector<1x241xi32>
    %c0_i32_28 = arith.constant 0 : i32
    %61 = arith.cmpi slt, %54, %c0_i32_28 : i32
    %62 = vector.broadcast %61 : i1 to vector<1x241xi1>
    %63 = vector.broadcast %62 : vector<1x241xi1> to vector<1x241xi1>
    %64 = arith.xori %60, %63 : vector<1x241xi1>
    %65 = arith.andi %64, %58 : vector<1x241xi1>
    %66 = vector.broadcast %54 : i32 to vector<1x241xi32>
    %67 = arith.addi %56, %66 : vector<1x241xi32>
    %68 = arith.select %65, %67, %56 : vector<1x241xi1>, vector<1x241xi32>
    %c1_i32_29 = arith.constant 1 : i32
    %69 = vector.broadcast %c1_i32_29 : i32 to vector<1x241xi32>
    %70 = arith.addi %68, %69 : vector<1x241xi32>
    %c0_i32_30 = arith.constant 0 : i32
    %71 = vector.broadcast %c0_i32_30 : i32 to vector<1x241xi32>
    %72 = arith.cmpi sge, %70, %71 : vector<1x241xi32>
    %c1_i32_31 = arith.constant 1 : i32
    %73 = vector.broadcast %c1_i32_31 : i32 to vector<1x241xi32>
    %74 = arith.addi %68, %73 : vector<1x241xi32>
    %c16_i32_32 = arith.constant 16 : i32
    %75 = vector.broadcast %c16_i32_32 : i32 to vector<1x241xi32>
    %76 = arith.cmpi slt, %74, %75 : vector<1x241xi32>
    %77 = arith.andi %72, %76 : vector<1x241xi1>
    %cst_33 = arith.constant 0.000000e+00 : bf16
    %78 = vector.broadcast %cst_33 : bf16 to vector<16x241xbf16>
    %79 = vector.shape_cast %77 : vector<1x241xi1> to vector<1x241xi1>
    %80 = vector.broadcast %79 : vector<1x241xi1> to vector<16x241xi1>
    %81 = arith.select %80, %49, %78 : vector<16x241xi1>, vector<16x241xbf16>
    %c32 = arith.constant 32 : index
    %c15 = arith.constant 15 : index
    %82 = vector.load %arg9[%c32, %c15] : memref<144x256xbf16, #tpu.memory_space<vmem>>, vector<16x241xbf16>
    tpu.vector_store %arg9[%c32, %c15], %81 {strides = array<i32>} : memref<144x256xbf16, #tpu.memory_space<vmem>>, vector<16x241xbf16>,
    %83 = vector.extract_strided_slice %10 {offsets = [0, 0], sizes = [16, 255], strides = [1, 1]} : vector<16x256xbf16> to vector<16x255xbf16>
    %84 = tpu.iota {dimensions = array<i32: 1>} : vector<1x255xi32>
    %c1_i32_34 = arith.constant 1 : i32
    %85 = vector.broadcast %c1_i32_34 : i32 to vector<1x255xi32>
    %86 = arith.addi %84, %85 : vector<1x255xi32>
    %c16_i32_35 = arith.constant 16 : i32
    %c0_i32_36 = arith.constant 0 : i32
    %87 = arith.cmpi eq, %c16_i32_35, %c0_i32_36 : i32
    %c1_i32_37 = arith.constant 1 : i32
    %88 = arith.select %87, %c1_i32_37, %c16_i32_35 : i32
    %89 = vector.broadcast %88 : i32 to vector<1x255xi32>
    %90 = arith.remsi %86, %89 : vector<1x255xi32>
    %c0_i32_38 = arith.constant 0 : i32
    %91 = vector.broadcast %c0_i32_38 : i32 to vector<1x255xi32>
    %92 = arith.cmpi ne, %90, %91 : vector<1x255xi32>
    %c0_i32_39 = arith.constant 0 : i32
    %93 = vector.broadcast %c0_i32_39 : i32 to vector<1x255xi32>
    %94 = arith.cmpi slt, %90, %93 : vector<1x255xi32>
    %c0_i32_40 = arith.constant 0 : i32
    %95 = arith.cmpi slt, %88, %c0_i32_40 : i32
    %96 = vector.broadcast %95 : i1 to vector<1x255xi1>
    %97 = vector.broadcast %96 : vector<1x255xi1> to vector<1x255xi1>
    %98 = arith.xori %94, %97 : vector<1x255xi1>
    %99 = arith.andi %98, %92 : vector<1x255xi1>
    %100 = vector.broadcast %88 : i32 to vector<1x255xi32>
    %101 = arith.addi %90, %100 : vector<1x255xi32>
    %102 = arith.select %99, %101, %90 : vector<1x255xi1>, vector<1x255xi32>
    %c-1_i32_41 = arith.constant -1 : i32
    %103 = vector.broadcast %c-1_i32_41 : i32 to vector<1x255xi32>
    %104 = arith.addi %102, %103 : vector<1x255xi32>
    %c0_i32_42 = arith.constant 0 : i32
    %105 = vector.broadcast %c0_i32_42 : i32 to vector<1x255xi32>
    %106 = arith.cmpi sge, %104, %105 : vector<1x255xi32>
    %c-1_i32_43 = arith.constant -1 : i32
    %107 = vector.broadcast %c-1_i32_43 : i32 to vector<1x255xi32>
    %108 = arith.addi %102, %107 : vector<1x255xi32>
    %c16_i32_44 = arith.constant 16 : i32
    %109 = vector.broadcast %c16_i32_44 : i32 to vector<1x255xi32>
    %110 = arith.cmpi slt, %108, %109 : vector<1x255xi32>
    %111 = arith.andi %106, %110 : vector<1x255xi1>
    %cst_45 = arith.constant 0.000000e+00 : bf16
    %112 = vector.broadcast %cst_45 : bf16 to vector<16x255xbf16>
    %113 = vector.shape_cast %111 : vector<1x255xi1> to vector<1x255xi1>
    %114 = vector.broadcast %113 : vector<1x255xi1> to vector<16x255xi1>
    %115 = arith.select %114, %83, %112 : vector<16x255xi1>, vector<16x255xbf16>
    %c48 = arith.constant 48 : index
    %c1 = arith.constant 1 : index
    %116 = vector.load %arg9[%c48, %c1] : memref<144x256xbf16, #tpu.memory_space<vmem>>, vector<16x255xbf16>
    tpu.vector_store %arg9[%c48, %c1], %115 {strides = array<i32>} : memref<144x256xbf16, #tpu.memory_space<vmem>>, vector<16x255xbf16>,
    %c64 = arith.constant 64 : index
    %c0_46 = arith.constant 0 : index
    %117 = vector.load %arg9[%c64, %c0_46] : memref<144x256xbf16, #tpu.memory_space<vmem>>, vector<16x256xbf16>
    tpu.vector_store %arg9[%c64, %c0_46], %10 {strides = array<i32>} : memref<144x256xbf16, #tpu.memory_space<vmem>>, vector<16x256xbf16>,
    %118 = vector.extract_strided_slice %10 {offsets = [0, 1], sizes = [16, 255], strides = [1, 1]} : vector<16x256xbf16> to vector<16x255xbf16>
    %119 = tpu.iota {dimensions = array<i32: 1>} : vector<1x255xi32>
    %c0_i32_47 = arith.constant 0 : i32
    %120 = vector.broadcast %c0_i32_47 : i32 to vector<1x255xi32>
    %121 = arith.addi %119, %120 : vector<1x255xi32>
    %c16_i32_48 = arith.constant 16 : i32
    %c0_i32_49 = arith.constant 0 : i32
    %122 = arith.cmpi eq, %c16_i32_48, %c0_i32_49 : i32
    %c1_i32_50 = arith.constant 1 : i32
    %123 = arith.select %122, %c1_i32_50, %c16_i32_48 : i32
    %124 = vector.broadcast %123 : i32 to vector<1x255xi32>
    %125 = arith.remsi %121, %124 : vector<1x255xi32>
    %c0_i32_51 = arith.constant 0 : i32
    %126 = vector.broadcast %c0_i32_51 : i32 to vector<1x255xi32>
    %127 = arith.cmpi ne, %125, %126 : vector<1x255xi32>
    %c0_i32_52 = arith.constant 0 : i32
    %128 = vector.broadcast %c0_i32_52 : i32 to vector<1x255xi32>
    %129 = arith.cmpi slt, %125, %128 : vector<1x255xi32>
    %c0_i32_53 = arith.constant 0 : i32
    %130 = arith.cmpi slt, %123, %c0_i32_53 : i32
    %131 = vector.broadcast %130 : i1 to vector<1x255xi1>
    %132 = vector.broadcast %131 : vector<1x255xi1> to vector<1x255xi1>
    %133 = arith.xori %129, %132 : vector<1x255xi1>
    %134 = arith.andi %133, %127 : vector<1x255xi1>
    %135 = vector.broadcast %123 : i32 to vector<1x255xi32>
    %136 = arith.addi %125, %135 : vector<1x255xi32>
    %137 = arith.select %134, %136, %125 : vector<1x255xi1>, vector<1x255xi32>
    %c1_i32_54 = arith.constant 1 : i32
    %138 = vector.broadcast %c1_i32_54 : i32 to vector<1x255xi32>
    %139 = arith.addi %137, %138 : vector<1x255xi32>
    %c0_i32_55 = arith.constant 0 : i32
    %140 = vector.broadcast %c0_i32_55 : i32 to vector<1x255xi32>
    %141 = arith.cmpi sge, %139, %140 : vector<1x255xi32>
    %c1_i32_56 = arith.constant 1 : i32
    %142 = vector.broadcast %c1_i32_56 : i32 to vector<1x255xi32>
    %143 = arith.addi %137, %142 : vector<1x255xi32>
    %c16_i32_57 = arith.constant 16 : i32
    %144 = vector.broadcast %c16_i32_57 : i32 to vector<1x255xi32>
    %145 = arith.cmpi slt, %143, %144 : vector<1x255xi32>
    %146 = arith.andi %141, %145 : vector<1x255xi1>
    %cst_58 = arith.constant 0.000000e+00 : bf16
    %147 = vector.broadcast %cst_58 : bf16 to vector<16x255xbf16>
    %148 = vector.shape_cast %146 : vector<1x255xi1> to vector<1x255xi1>
    %149 = vector.broadcast %148 : vector<1x255xi1> to vector<16x255xi1>
    %150 = arith.select %149, %118, %147 : vector<16x255xi1>, vector<16x255xbf16>
    %c80 = arith.constant 80 : index
    %c0_59 = arith.constant 0 : index
    %151 = vector.load %arg9[%c80, %c0_59] : memref<144x256xbf16, #tpu.memory_space<vmem>>, vector<16x255xbf16>
    tpu.vector_store %arg9[%c80, %c0_59], %150 {strides = array<i32>} : memref<144x256xbf16, #tpu.memory_space<vmem>>, vector<16x255xbf16>,
    %152 = vector.extract_strided_slice %10 {offsets = [0, 15], sizes = [16, 241], strides = [1, 1]} : vector<16x256xbf16> to vector<16x241xbf16>
    %153 = tpu.iota {dimensions = array<i32: 1>} : vector<1x241xi32>
    %c0_i32_60 = arith.constant 0 : i32
    %154 = vector.broadcast %c0_i32_60 : i32 to vector<1x241xi32>
    %155 = arith.addi %153, %154 : vector<1x241xi32>
    %c16_i32_61 = arith.constant 16 : i32
    %c0_i32_62 = arith.constant 0 : i32
    %156 = arith.cmpi eq, %c16_i32_61, %c0_i32_62 : i32
    %c1_i32_63 = arith.constant 1 : i32
    %157 = arith.select %156, %c1_i32_63, %c16_i32_61 : i32
    %158 = vector.broadcast %157 : i32 to vector<1x241xi32>
    %159 = arith.remsi %155, %158 : vector<1x241xi32>
    %c0_i32_64 = arith.constant 0 : i32
    %160 = vector.broadcast %c0_i32_64 : i32 to vector<1x241xi32>
    %161 = arith.cmpi ne, %159, %160 : vector<1x241xi32>
    %c0_i32_65 = arith.constant 0 : i32
    %162 = vector.broadcast %c0_i32_65 : i32 to vector<1x241xi32>
    %163 = arith.cmpi slt, %159, %162 : vector<1x241xi32>
    %c0_i32_66 = arith.constant 0 : i32
    %164 = arith.cmpi slt, %157, %c0_i32_66 : i32
    %165 = vector.broadcast %164 : i1 to vector<1x241xi1>
    %166 = vector.broadcast %165 : vector<1x241xi1> to vector<1x241xi1>
    %167 = arith.xori %163, %166 : vector<1x241xi1>
    %168 = arith.andi %167, %161 : vector<1x241xi1>
    %169 = vector.broadcast %157 : i32 to vector<1x241xi32>
    %170 = arith.addi %159, %169 : vector<1x241xi32>
    %171 = arith.select %168, %170, %159 : vector<1x241xi1>, vector<1x241xi32>
    %c-1_i32_67 = arith.constant -1 : i32
    %172 = vector.broadcast %c-1_i32_67 : i32 to vector<1x241xi32>
    %173 = arith.addi %171, %172 : vector<1x241xi32>
    %c0_i32_68 = arith.constant 0 : i32
    %174 = vector.broadcast %c0_i32_68 : i32 to vector<1x241xi32>
    %175 = arith.cmpi sge, %173, %174 : vector<1x241xi32>
    %c-1_i32_69 = arith.constant -1 : i32
    %176 = vector.broadcast %c-1_i32_69 : i32 to vector<1x241xi32>
    %177 = arith.addi %171, %176 : vector<1x241xi32>
    %c16_i32_70 = arith.constant 16 : i32
    %178 = vector.broadcast %c16_i32_70 : i32 to vector<1x241xi32>
    %179 = arith.cmpi slt, %177, %178 : vector<1x241xi32>
    %180 = arith.andi %175, %179 : vector<1x241xi1>
    %cst_71 = arith.constant 0.000000e+00 : bf16
    %181 = vector.broadcast %cst_71 : bf16 to vector<16x241xbf16>
    %182 = vector.shape_cast %180 : vector<1x241xi1> to vector<1x241xi1>
    %183 = vector.broadcast %182 : vector<1x241xi1> to vector<16x241xi1>
    %184 = arith.select %183, %152, %181 : vector<16x241xi1>, vector<16x241xbf16>
    %c96 = arith.constant 96 : index
    %c0_72 = arith.constant 0 : index
    %185 = vector.load %arg9[%c96, %c0_72] : memref<144x256xbf16, #tpu.memory_space<vmem>>, vector<16x241xbf16>
    tpu.vector_store %arg9[%c96, %c0_72], %184 {strides = array<i32>} : memref<144x256xbf16, #tpu.memory_space<vmem>>, vector<16x241xbf16>,
    %186 = vector.extract_strided_slice %10 {offsets = [0, 16], sizes = [16, 240], strides = [1, 1]} : vector<16x256xbf16> to vector<16x240xbf16>
    %c112 = arith.constant 112 : index
    %c0_73 = arith.constant 0 : index
    %187 = vector.load %arg9[%c112, %c0_73] : memref<144x256xbf16, #tpu.memory_space<vmem>>, vector<16x240xbf16>
    tpu.vector_store %arg9[%c112, %c0_73], %186 {strides = array<i32>} : memref<144x256xbf16, #tpu.memory_space<vmem>>, vector<16x240xbf16>,
    %188 = vector.extract_strided_slice %10 {offsets = [0, 17], sizes = [16, 239], strides = [1, 1]} : vector<16x256xbf16> to vector<16x239xbf16>
    %189 = tpu.iota {dimensions = array<i32: 1>} : vector<1x239xi32>
    %c0_i32_74 = arith.constant 0 : i32
    %190 = vector.broadcast %c0_i32_74 : i32 to vector<1x239xi32>
    %191 = arith.addi %189, %190 : vector<1x239xi32>
    %c16_i32_75 = arith.constant 16 : i32
    %c0_i32_76 = arith.constant 0 : i32
    %192 = arith.cmpi eq, %c16_i32_75, %c0_i32_76 : i32
    %c1_i32_77 = arith.constant 1 : i32
    %193 = arith.select %192, %c1_i32_77, %c16_i32_75 : i32
    %194 = vector.broadcast %193 : i32 to vector<1x239xi32>
    %195 = arith.remsi %191, %194 : vector<1x239xi32>
    %c0_i32_78 = arith.constant 0 : i32
    %196 = vector.broadcast %c0_i32_78 : i32 to vector<1x239xi32>
    %197 = arith.cmpi ne, %195, %196 : vector<1x239xi32>
    %c0_i32_79 = arith.constant 0 : i32
    %198 = vector.broadcast %c0_i32_79 : i32 to vector<1x239xi32>
    %199 = arith.cmpi slt, %195, %198 : vector<1x239xi32>
    %c0_i32_80 = arith.constant 0 : i32
    %200 = arith.cmpi slt, %193, %c0_i32_80 : i32
    %201 = vector.broadcast %200 : i1 to vector<1x239xi1>
    %202 = vector.broadcast %201 : vector<1x239xi1> to vector<1x239xi1>
    %203 = arith.xori %199, %202 : vector<1x239xi1>
    %204 = arith.andi %203, %197 : vector<1x239xi1>
    %205 = vector.broadcast %193 : i32 to vector<1x239xi32>
    %206 = arith.addi %195, %205 : vector<1x239xi32>
    %207 = arith.select %204, %206, %195 : vector<1x239xi1>, vector<1x239xi32>
    %c1_i32_81 = arith.constant 1 : i32
    %208 = vector.broadcast %c1_i32_81 : i32 to vector<1x239xi32>
    %209 = arith.addi %207, %208 : vector<1x239xi32>
    %c0_i32_82 = arith.constant 0 : i32
    %210 = vector.broadcast %c0_i32_82 : i32 to vector<1x239xi32>
    %211 = arith.cmpi sge, %209, %210 : vector<1x239xi32>
    %c1_i32_83 = arith.constant 1 : i32
    %212 = vector.broadcast %c1_i32_83 : i32 to vector<1x239xi32>
    %213 = arith.addi %207, %212 : vector<1x239xi32>
    %c16_i32_84 = arith.constant 16 : i32
    %214 = vector.broadcast %c16_i32_84 : i32 to vector<1x239xi32>
    %215 = arith.cmpi slt, %213, %214 : vector<1x239xi32>
    %216 = arith.andi %211, %215 : vector<1x239xi1>
    %cst_85 = arith.constant 0.000000e+00 : bf16
    %217 = vector.broadcast %cst_85 : bf16 to vector<16x239xbf16>
    %218 = vector.shape_cast %216 : vector<1x239xi1> to vector<1x239xi1>
    %219 = vector.broadcast %218 : vector<1x239xi1> to vector<16x239xi1>
    %220 = arith.select %219, %188, %217 : vector<16x239xi1>, vector<16x239xbf16>
    %c128 = arith.constant 128 : index
    %c0_86 = arith.constant 0 : index
    %221 = vector.load %arg9[%c128, %c0_86] : memref<144x256xbf16, #tpu.memory_space<vmem>>, vector<16x239xbf16>
    tpu.vector_store %arg9[%c128, %c0_86], %220 {strides = array<i32>} : memref<144x256xbf16, #tpu.memory_space<vmem>>, vector<16x239xbf16>,
    %c0_87 = arith.constant 0 : index
    %c0_88 = arith.constant 0 : index
    %222 = vector.load %arg4[%c0_87, %c0_88] : memref<32x144xbf16, #tpu.memory_space<vmem>>, vector<32x144xbf16>
    %c0_89 = arith.constant 0 : index
    %c0_90 = arith.constant 0 : index
    %223 = vector.load %arg9[%c0_89, %c0_90] : memref<144x256xbf16, #tpu.memory_space<vmem>>, vector<144x256xbf16>
    %cst_91 = arith.constant dense<0.000000e+00> : vector<32x256xf32>
    %224 = tpu.matmul %222, %223, %cst_91 {dimension_numbers = #tpu.dot_dimension_numbers<[1], [0], [0], [1], [0, 0, 1, 1], [], []>} : vector<32x144xbf16>, vector<144x256xbf16>, vector<32x256xf32> -> vector<32x256xf32>
    %c0_92 = arith.constant 0 : index
    %c0_93 = arith.constant 0 : index
    %225 = vector.load %arg5[%c0_92, %c0_93] : memref<32x1xf32, #tpu.memory_space<vmem>>, vector<32x1xf32>
    %226 = vector.broadcast %225 : vector<32x1xf32> to vector<32x256xf32>
    %227 = arith.addf %224, %226 : vector<32x256xf32>
    %228 = vector.extract_strided_slice %227 {offsets = [0, 0], sizes = [8, 256], strides = [1, 1]} : vector<32x256xf32> to vector<8x256xf32>
    %229 = arith.negf %228 : vector<8x256xf32>
    %230 = math.exp %229 : vector<8x256xf32>
    %cst_94 = arith.constant 1.000000e+00 : f32
    %231 = vector.broadcast %cst_94 : f32 to vector<8x256xf32>
    %232 = arith.addf %231, %230 : vector<8x256xf32>
    %233 = arith.divf %231, %232 : vector<8x256xf32>
    %234 = vector.extract_strided_slice %227 {offsets = [8, 0], sizes = [8, 256], strides = [1, 1]} : vector<32x256xf32> to vector<8x256xf32>
    %235 = arith.negf %234 : vector<8x256xf32>
    %236 = math.exp %235 : vector<8x256xf32>
    %cst_95 = arith.constant 1.000000e+00 : f32
    %237 = vector.broadcast %cst_95 : f32 to vector<8x256xf32>
    %238 = arith.addf %237, %236 : vector<8x256xf32>
    %239 = arith.divf %237, %238 : vector<8x256xf32>
    %240 = vector.extract_strided_slice %227 {offsets = [16, 0], sizes = [8, 256], strides = [1, 1]} : vector<32x256xf32> to vector<8x256xf32>
    %241 = arith.negf %240 : vector<8x256xf32>
    %242 = math.exp %241 : vector<8x256xf32>
    %cst_96 = arith.constant 1.000000e+00 : f32
    %243 = vector.broadcast %cst_96 : f32 to vector<8x256xf32>
    %244 = arith.addf %243, %242 : vector<8x256xf32>
    %245 = arith.divf %243, %244 : vector<8x256xf32>
    %246 = vector.extract_strided_slice %227 {offsets = [24, 0], sizes = [8, 256], strides = [1, 1]} : vector<32x256xf32> to vector<8x256xf32>
    %247 = math.tanh %246 : vector<8x256xf32>
    %c0_97 = arith.constant 0 : index
    %c0_98 = arith.constant 0 : index
    %c0_99 = arith.constant 0 : index
    %248 = vector.load %arg3[%c0_97, %c0_98, %c0_99] : memref<1x8x256xf32, #tpu.memory_space<vmem>>, vector<1x8x256xf32>
    %249 = vector.shape_cast %248 : vector<1x8x256xf32> to vector<8x256xf32>
    %250 = arith.mulf %239, %249 : vector<8x256xf32>
    %251 = arith.mulf %233, %247 : vector<8x256xf32>
    %252 = arith.addf %250, %251 : vector<8x256xf32>
    %253 = math.tanh %252 : vector<8x256xf32>
    %254 = arith.mulf %245, %253 : vector<8x256xf32>
    %c0_100 = arith.constant 0 : index
    %c0_101 = arith.constant 0 : index
    %c0_102 = arith.constant 0 : index
    %255 = vector.load %arg6[%c0_100, %c0_101, %c0_102] : memref<1x8x256xf32, #tpu.memory_space<vmem>>, vector<1x8x256xf32>
    %256 = vector.shape_cast %255 : vector<1x8x256xf32> to vector<8x256xf32>
    %257 = vector.shape_cast %254 : vector<8x256xf32> to vector<1x8x256xf32>
    tpu.vector_store %arg6[%c0_100, %c0_101, %c0_102], %257 {strides = array<i32>} : memref<1x8x256xf32, #tpu.memory_space<vmem>>, vector<1x8x256xf32>,
    %c0_103 = arith.constant 0 : index
    %c0_104 = arith.constant 0 : index
    %c0_105 = arith.constant 0 : index
    %258 = vector.load %arg7[%c0_103, %c0_104, %c0_105] : memref<1x8x256xf32, #tpu.memory_space<vmem>>, vector<1x8x256xf32>
    %259 = vector.shape_cast %258 : vector<1x8x256xf32> to vector<8x256xf32>
    %260 = vector.shape_cast %252 : vector<8x256xf32> to vector<1x8x256xf32>
    tpu.vector_store %arg7[%c0_103, %c0_104, %c0_105], %260 {strides = array<i32>} : memref<1x8x256xf32, #tpu.memory_space<vmem>>, vector<1x8x256xf32>,
    return
  }
  func.func @transform_0(%arg0: i32) -> (i32, i32, i32) {
    %c0_i32 = arith.constant 0 : i32
    %c0_i32_0 = arith.constant 0 : i32
    %c0_i32_1 = arith.constant 0 : i32
    return %arg0, %c0_i32, %c0_i32_0 : i32, i32, i32
  }
  func.func @transform_1(%arg0: i32) -> (i32, i32, i32) {
    %c0_i32 = arith.constant 0 : i32
    %c0_i32_0 = arith.constant 0 : i32
    %c0_i32_1 = arith.constant 0 : i32
    return %arg0, %c0_i32, %c0_i32_0 : i32, i32, i32
  }
  func.func @transform_2(%arg0: i32) -> (i32, i32, i32) {
    %c0_i32 = arith.constant 0 : i32
    %c0_i32_0 = arith.constant 0 : i32
    %c0_i32_1 = arith.constant 0 : i32
    return %arg0, %c0_i32, %c0_i32_0 : i32, i32, i32
  }
  func.func @transform_3(%arg0: i32) -> (i32, i32) {
    %c0_i32 = arith.constant 0 : i32
    %c0_i32_0 = arith.constant 0 : i32
    %c0_i32_1 = arith.constant 0 : i32
    return %c0_i32, %c0_i32_0 : i32, i32
  }
  func.func @transform_4(%arg0: i32) -> (i32, i32) {
    %c0_i32 = arith.constant 0 : i32
    %c0_i32_0 = arith.constant 0 : i32
    %c0_i32_1 = arith.constant 0 : i32
    return %c0_i32, %c0_i32_0 : i32, i32
  }
  func.func @transform_5(%arg0: i32) -> (i32, i32, i32) {
    %c0_i32 = arith.constant 0 : i32
    %c0_i32_0 = arith.constant 0 : i32
    %c0_i32_1 = arith.constant 0 : i32
    return %arg0, %c0_i32, %c0_i32_0 : i32, i32, i32
  }
  func.func @transform_6(%arg0: i32) -> (i32, i32, i32) {
    %c0_i32 = arith.constant 0 : i32
    %c0_i32_0 = arith.constant 0 : i32
    %c0_i32_1 = arith.constant 0 : i32
    return %arg0, %c0_i32, %c0_i32_0 : i32, i32, i32
  }
}

</mosaic_0001>

<llo_original>
// kernel: rnncell_forward.1
$region0: #{rnncell_forward.1}
  #allocation0 [shape = 'u32[]', space=smem, size = 0x4, offset = 0x4, fixed_abs, tag = 'smem constant byte address 0x4 - core index']
  #allocation1 [shape = 'u32[144,128]{1,0:T(1,128)}', space=vmem, size = 0x12000, scoped, tag = 'internal scratch']
  #allocation2 [shape = 'bf16[16,256]{1,0:T(16,128)(2,1)}', space=vmem, size = 0x2000, scoped, tag = 'scratch operand']
  #allocation3 [shape = 'bf16[144,256]{1,0:T(16,128)(2,1)}', space=vmem, size = 0x12000, scoped, tag = 'scratch operand']
  %s0 = inlined_call_operand.vmem [shape: f32[2,4,256], index: 0, kind: input, shape index: {}]
  %s1 = inlined_call_operand.vmem [shape: f32[2,8,256], index: 1, kind: input, shape index: {}, may-alias: {1,5}]
  %s2 = inlined_call_operand.vmem [shape: f32[2,8,256], index: 2, kind: input, shape index: {}, may-alias: {2,6}]
  %s3 = inlined_call_operand.vmem [shape: bf16[32,144], index: 3, kind: input, shape index: {}]
  %s4 = inlined_call_operand.vmem [shape: f32[32,1], index: 4, kind: input, shape index: {}]
  %s5 = inlined_call_operand.vmem [shape: f32[2,8,256], index: 5, kind: output, shape index: {0}, may-alias: {1,5}]
  %s6 = inlined_call_operand.vmem [shape: f32[2,8,256], index: 6, kind: output, shape index: {1}, may-alias: {2,6}]
  %7 = xla_tuple %s5, %s6
  %s8 = sld [smem:[#allocation0]]
  $region61: #{rnncell_forward.1} parent=0
    _
  %s10 = ssub.s32 1, %s8
  %s11 = scalar_select 0, %s10, %s8
  loop: start=0, step=1, limit=4
  $region2: #{rnncell_forward.1} parent=0 // loop_pre_header
    _
  $region3: #{rnncell_forward.1} parent=0 // loop_header
    %s13 = sphi 0, %s17
    %p14 = scmp.ge.s32.totalorder %s13, 4
    %s23 = sphi 0, %s25
    %s26 = sphi 0, %s23
    %s27 = sphi 0, %s26
    %s43 = sphi 0, %s27
    %s49 = sphi 0, %s51
    %s52 = sphi 0, %s49
    %s53 = sphi 0, %s52
    %s69 = sphi 0, %s53
    %s75 = sphi 0, %s77
    %s78 = sphi 0, %s75
    %s79 = sphi 0, %s78
    %s95 = sphi 0, %s79
    %s99 = sphi 0, %s99
    %s101 = sphi 0, %s99
    %s102 = sphi 0, %s101
    %s116 = sphi 0, %s102
    %s120 = sphi 0, %s120
    %s122 = sphi 0, %s120
    %s123 = sphi 0, %s122
    %s137 = sphi 0, %s123
    %s143 = sphi 0, %s145
    %s146 = sphi 0, %s143
    %s147 = sphi 0, %s146
    %s163 = sphi 0, %s147
    %s169 = sphi 0, %s171
    %s172 = sphi 0, %s169
    %s173 = sphi 0, %s172
    %s189 = sphi 0, %s173
  $region4: #{rnncell_forward.1} parent=0 // loop_header_branch
    %16 = sbr.rel (%p14) target = $region8
  $region5: #{rnncell_forward.1} parent=0 // loop_body
    %s18 = ssub.s32 %s13, 1
    %s19 = ssub.s32 %s13, 2
    %s20 = sadd.s32 %s13, 1
    %s21 = ssub.s32 %s13, %s20
    %p22 = scmp.eq.s32.totalorder %s21, 0
    %s24 = sadd.s32 %s23, 1
    %s25 = scalar_select %p22, %s23, %s24
    %p28 = pneg %p22
    %p29 = scmp.eq.s32.totalorder %s13, 1
    %p30 = por %p28, %p29
    %p31 = scmp.ne.s32.totalorder %s23, %s26
    %p32 = scmp.eq.s32.totalorder %s13, 0
    %p33 = por %p31, %p32
    %p34 = scmp.ne.s32.totalorder %s23, %s26
    %p35 = scmp.eq.s32.totalorder %s18, 1
    %p36 = por %p34, %p35
    %p37 = scmp.ne.s32.totalorder %s26, %s27
    %p38 = scmp.eq.s32.totalorder %s18, 0
    %p39 = por %p37, %p38
    %p40 = scmp.ne.s32.totalorder %s26, %s27
    %p41 = scmp.eq.s32.totalorder %s19, 1
    %p42 = por %p40, %p41
    %p44 = scmp.ne.s32.totalorder %s27, %s43
    %p45 = scmp.eq.s32.totalorder %s19, 0
    %p46 = por %p44, %p45
    %s47 = ssub.s32 %s13, %s20
    %p48 = scmp.eq.s32.totalorder %s47, 0
    %s50 = sadd.s32 %s49, 1
    %s51 = scalar_select %p48, %s49, %s50
    %p54 = pneg %p48
    %p55 = scmp.eq.s32.totalorder %s13, 1
    %p56 = por %p54, %p55
    %p57 = scmp.ne.s32.totalorder %s49, %s52
    %p58 = scmp.eq.s32.totalorder %s13, 0
    %p59 = por %p57, %p58
    %p60 = scmp.ne.s32.totalorder %s49, %s52
    %p61 = scmp.eq.s32.totalorder %s18, 1
    %p62 = por %p60, %p61
    %p63 = scmp.ne.s32.totalorder %s52, %s53
    %p64 = scmp.eq.s32.totalorder %s18, 0
    %p65 = por %p63, %p64
    %p66 = scmp.ne.s32.totalorder %s52, %s53
    %p67 = scmp.eq.s32.totalorder %s19, 1
    %p68 = por %p66, %p67
    %p70 = scmp.ne.s32.totalorder %s53, %s69
    %p71 = scmp.eq.s32.totalorder %s19, 0
    %p72 = por %p70, %p71
    %s73 = ssub.s32 %s13, %s20
    %p74 = scmp.eq.s32.totalorder %s73, 0
    %s76 = sadd.s32 %s75, 1
    %s77 = scalar_select %p74, %s75, %s76
    %p80 = pneg %p74
    %p81 = scmp.eq.s32.totalorder %s13, 1
    %p82 = por %p80, %p81
    %p83 = scmp.ne.s32.totalorder %s75, %s78
    %p84 = scmp.eq.s32.totalorder %s13, 0
    %p85 = por %p83, %p84
    %p86 = scmp.ne.s32.totalorder %s75, %s78
    %p87 = scmp.eq.s32.totalorder %s18, 1
    %p88 = por %p86, %p87
    %p89 = scmp.ne.s32.totalorder %s78, %s79
    %p90 = scmp.eq.s32.totalorder %s18, 0
    %p91 = por %p89, %p90
    %p92 = scmp.ne.s32.totalorder %s78, %s79
    %p93 = scmp.eq.s32.totalorder %s19, 1
    %p94 = por %p92, %p93
    %p96 = scmp.ne.s32.totalorder %s79, %s95
    %p97 = scmp.eq.s32.totalorder %s19, 0
    %p98 = por %p96, %p97
    %s100 = sadd.s32 %s99, 1
    %p103 = scmp.eq.s32.totalorder %s13, 1
    %p104 = scmp.ne.s32.totalorder %s99, %s101
    %p105 = scmp.eq.s32.totalorder %s13, 0
    %p106 = por %p104, %p105
    %p107 = scmp.ne.s32.totalorder %s99, %s101
    %p108 = scmp.eq.s32.totalorder %s18, 1
    %p109 = por %p107, %p108
    %p110 = scmp.ne.s32.totalorder %s101, %s102
    %p111 = scmp.eq.s32.totalorder %s18, 0
    %p112 = por %p110, %p111
    %p113 = scmp.ne.s32.totalorder %s101, %s102
    %p114 = scmp.eq.s32.totalorder %s19, 1
    %p115 = por %p113, %p114
    %p117 = scmp.ne.s32.totalorder %s102, %s116
    %p118 = scmp.eq.s32.totalorder %s19, 0
    %p119 = por %p117, %p118
    %s121 = sadd.s32 %s120, 1
    %p124 = scmp.eq.s32.totalorder %s13, 1
    %p125 = scmp.ne.s32.totalorder %s120, %s122
    %p126 = scmp.eq.s32.totalorder %s13, 0
    %p127 = por %p125, %p126
    %p128 = scmp.ne.s32.totalorder %s120, %s122
    %p129 = scmp.eq.s32.totalorder %s18, 1
    %p130 = por %p128, %p129
    %p131 = scmp.ne.s32.totalorder %s122, %s123
    %p132 = scmp.eq.s32.totalorder %s18, 0
    %p133 = por %p131, %p132
    %p134 = scmp.ne.s32.totalorder %s122, %s123
    %p135 = scmp.eq.s32.totalorder %s19, 1
    %p136 = por %p134, %p135
    %p138 = scmp.ne.s32.totalorder %s123, %s137
    %p139 = scmp.eq.s32.totalorder %s19, 0
    %p140 = por %p138, %p139
    %s141 = ssub.s32 %s13, %s20
    %p142 = scmp.eq.s32.totalorder %s141, 0
    %s144 = sadd.s32 %s143, 1
    %s145 = scalar_select %p142, %s143, %s144
    %p148 = pneg %p142
    %p149 = scmp.eq.s32.totalorder %s13, 1
    %p150 = por %p148, %p149
    %p151 = scmp.ne.s32.totalorder %s143, %s146
    %p152 = scmp.eq.s32.totalorder %s13, 0
    %p153 = por %p151, %p152
    %p154 = scmp.ne.s32.totalorder %s143, %s146
    %p155 = scmp.eq.s32.totalorder %s18, 1
    %p156 = por %p154, %p155
    %p157 = scmp.ne.s32.totalorder %s146, %s147
    %p158 = scmp.eq.s32.totalorder %s18, 0
    %p159 = por %p157, %p158
    %p160 = scmp.ne.s32.totalorder %s146, %s147
    %p161 = scmp.eq.s32.totalorder %s19, 1
    %p162 = por %p160, %p161
    %p164 = scmp.ne.s32.totalorder %s147, %s163
    %p165 = scmp.eq.s32.totalorder %s19, 0
    %p166 = por %p164, %p165
    %s167 = ssub.s32 %s13, %s20
    %p168 = scmp.eq.s32.totalorder %s167, 0
    %s170 = sadd.s32 %s169, 1
    %s171 = scalar_select %p168, %s169, %s170
    %p174 = pneg %p168
    %p175 = scmp.eq.s32.totalorder %s13, 1
    %p176 = por %p174, %p175
    %p177 = scmp.ne.s32.totalorder %s169, %s172
    %p178 = scmp.eq.s32.totalorder %s13, 0
    %p179 = por %p177, %p178
    %p180 = scmp.ne.s32.totalorder %s169, %s172
    %p181 = scmp.eq.s32.totalorder %s18, 1
    %p182 = por %p180, %p181
    %p183 = scmp.ne.s32.totalorder %s172, %s173
    %p184 = scmp.eq.s32.totalorder %s18, 0
    %p185 = por %p183, %p184
    %p186 = scmp.ne.s32.totalorder %s172, %s173
    %p187 = scmp.eq.s32.totalorder %s19, 1
    %p188 = por %p186, %p187
    %p190 = scmp.ne.s32.totalorder %s173, %s189
    %p191 = scmp.eq.s32.totalorder %s19, 0
    %p192 = por %p190, %p191
    %p193 = scmp.le.s32.totalorder 1, %s13
    %p194 = scmp.lt.s32.totalorder %s13, 3
    %p195 = pnand %p193, %p194
    %p196 = pneg %p195
    // Predicated region
    $region9: #{rnncell_forward.1} parent=5 // pred_check
      _
    $region10: #{rnncell_forward.1} parent=5 // pred_check_branch
      %198 = sbr.rel (%p195) target = $region12
    $region11: #{rnncell_forward.1} parent=5 // pred_region
      %s199 = ssub.s32 %s13, 1
      // Predicated region
      $region13: #{rnncell_forward.1} parent=11 // pred_check
        %p200 = pneg %p112
      $region14: #{rnncell_forward.1} parent=11 // pred_check_branch
        %202 = sbr.rel (%p200) target = $region16
      $region15: #{rnncell_forward.1} parent=11 // pred_region
        _
      $region16: #{rnncell_forward.1} parent=11 // pred_fallthru
        _
      // Predicated region
      $region17: #{rnncell_forward.1} parent=11 // pred_check
        %p203 = pneg %p133
      $region18: #{rnncell_forward.1} parent=11 // pred_check_branch
        %205 = sbr.rel (%p203) target = $region20
      $region19: #{rnncell_forward.1} parent=11 // pred_region
        _
      $region20: #{rnncell_forward.1} parent=11 // pred_fallthru
        _
    $region12: #{rnncell_forward.1} parent=5 // pred_fallthru
      _
    %p206 = scmp.lt.s32.totalorder %s13, 2
    // Predicated region
    $region21: #{rnncell_forward.1} parent=5 // pred_check
      %p207 = pneg %p206
    $region22: #{rnncell_forward.1} parent=5 // pred_check_branch
      %209 = sbr.rel (%p207) target = $region24
    $region23: #{rnncell_forward.1} parent=5 // pred_region
      // Predicated region
      $region25: #{rnncell_forward.1} parent=23 // pred_check
        %p210 = pneg %p33
      $region26: #{rnncell_forward.1} parent=23 // pred_check_branch
        %212 = sbr.rel (%p210) target = $region28
      $region27: #{rnncell_forward.1} parent=23 // pred_region
        %p213 = scmp.lt.s32.totalorder %s13, 1
        %s214 = scalar_select %p213, %s13, 1
        %s215 = smul.addr %s214, 2
        %s216 = smul.addr %s215, 4
        %s217 = scalar_lea.vmem %s0, %s216
      $region28: #{rnncell_forward.1} parent=23 // pred_fallthru
        _
      // Predicated region
      $region29: #{rnncell_forward.1} parent=23 // pred_check
        %p218 = pneg %p59
      $region30: #{rnncell_forward.1} parent=23 // pred_check_branch
        %220 = sbr.rel (%p218) target = $region32
      $region31: #{rnncell_forward.1} parent=23 // pred_region
        %p221 = scmp.lt.s32.totalorder %s13, 1
        %s222 = scalar_select %p221, %s13, 1
        %s223 = smul.addr %s222, 2
        %s224 = smul.addr %s223, 8
        %s225 = scalar_lea.vmem %s1, %s224
      $region32: #{rnncell_forward.1} parent=23 // pred_fallthru
        _
      // Predicated region
      $region33: #{rnncell_forward.1} parent=23 // pred_check
        %p226 = pneg %p85
      $region34: #{rnncell_forward.1} parent=23 // pred_check_branch
        %228 = sbr.rel (%p226) target = $region36
      $region35: #{rnncell_forward.1} parent=23 // pred_region
        %p229 = scmp.lt.s32.totalorder %s13, 1
        %s230 = scalar_select %p229, %s13, 1
        %s231 = smul.addr %s230, 2
        %s232 = smul.addr %s231, 8
        %s233 = scalar_lea.vmem %s2, %s232
      $region36: #{rnncell_forward.1} parent=23 // pred_fallthru
        _
    $region24: #{rnncell_forward.1} parent=5 // pred_fallthru
      _
    %p234 = scmp.le.s32.totalorder 1, %s13
    %p235 = scmp.lt.s32.totalorder %s13, 3
    %p236 = pnand %p234, %p235
    %p237 = pneg %p236
    // Predicated region
    $region37: #{rnncell_forward.1} parent=5 // pred_check
      _
    $region38: #{rnncell_forward.1} parent=5 // pred_check_branch
      %239 = sbr.rel (%p236) target = $region40
    $region39: #{rnncell_forward.1} parent=5 // pred_region
      %s240 = ssub.s32 %s13, 1
      %p241 = scmp.lt.s32.totalorder %s18, 1
      %s242 = scalar_select %p241, %s18, 1
      %s243 = smul.addr %s242, 2
      %s244 = smul.addr %s243, 4
      %s245 = scalar_lea.vmem %s0, %s244
      %p246 = pneg %p39
      %p247 = pneg %p36
      %p248 = scmp.lt.s32.totalorder %s18, 1
      %s249 = scalar_select %p248, %s18, 1
      %s250 = smul.addr %s249, 2
      %s251 = smul.addr %s250, 8
      %s252 = scalar_lea.vmem %s1, %s251
      %p253 = pneg %p65
      %p254 = pneg %p62
      %p255 = scmp.lt.s32.totalorder %s18, 1
      %s256 = scalar_select %p255, %s18, 1
      %s257 = smul.addr %s256, 2
      %s258 = smul.addr %s257, 8
      %s259 = scalar_lea.vmem %s2, %s258
      %p260 = pneg %p91
      %p261 = pneg %p88
      %p262 = pneg %p112
      %p263 = pneg %p109
      %p264 = pneg %p133
      %p265 = pneg %p130
      %p266 = pneg %p159
      %p267 = pneg %p156
      %p268 = scmp.lt.s32.totalorder %s18, 1
      %s269 = scalar_select %p268, %s18, 1
      %s270 = smul.addr %s269, 2
      %s271 = smul.addr %s270, 8
      %s272 = scalar_lea.vmem %s5, %s271
      %p273 = pneg %p185
      %p274 = pneg %p182
      %p275 = scmp.lt.s32.totalorder %s18, 1
      %s276 = scalar_select %p275, %s18, 1
      %s277 = smul.addr %s276, 2
      %s278 = smul.addr %s277, 8
      %s279 = scalar_lea.vmem %s6, %s278
      %p280 = scmp.lt.s32.totalorder %s18, 1
      %s281 = scalar_select %p280, %s18, 1
      %s282 = smul.addr %s281, 2
      %s283 = smul.addr %s282, 4
      %s284 = scalar_lea.vmem %s0, %s283
      %p285 = scmp.lt.s32.totalorder %s18, 1
      %s286 = scalar_select %p285, %s18, 1
      %s287 = smul.addr %s286, 2
      %s288 = smul.addr %s287, 8
      %s289 = scalar_lea.vmem %s1, %s288
      %p290 = scmp.lt.s32.totalorder %s18, 1
      %s291 = scalar_select %p290, %s18, 1
      %s292 = smul.addr %s291, 2
      %s293 = smul.addr %s292, 8
      %s294 = scalar_lea.vmem %s2, %s293
      %p295 = scmp.lt.s32.totalorder %s18, 1
      %s296 = scalar_select %p295, %s18, 1
      %s297 = smul.addr %s296, 2
      %s298 = smul.addr %s297, 8
      %s299 = scalar_lea.vmem %s5, %s298
      %p300 = scmp.lt.s32.totalorder %s18, 1
      %s301 = scalar_select %p300, %s18, 1
      %s302 = smul.addr %s301, 2
      %s303 = smul.addr %s302, 8
      %s304 = scalar_lea.vmem %s6, %s303
      %v308 = vld [vmem:[%s284] sm:$0xff]
      %v310 = vcombine.high %v308, %v308
      %v312 = vpack.c.bf16 %v308, %v308
      %v313 = vpack.c.bf16 %v310, %v310
      %314 = vst [vmem:[#allocation2] sm:$0x3] %v312
      %315 = vst [vmem:[#allocation2 + $0x8] sm:$0x3] %v313
      %v316 = vld [vmem:[%s289] sm:$0xff]
      %v317 = vld [vmem:[%s289 + $0x8] sm:$0xff]
      %v318 = vpack.c.bf16 %v316, %v316
      %v319 = vpack.c.bf16 %v317, %v317
      %v322 = vrot.slane %v318, 6
      %v323 = vrot.slane %v319, 6
      %326 = vst [vmem:[#allocation2] sm:$0x3c] %v322
      %327 = vst [vmem:[#allocation2 + $0x8] sm:$0x3c] %v323
      %328 = vst [vmem:[#allocation2] sm:$0xc0] 0
      %329 = vst [vmem:[#allocation2 + $0x8] sm:$0xc0] 0
      %v330 = vld [vmem:[#allocation2] sm:$0xff]
      %v331 = vld [vmem:[#allocation2 + $0x8] sm:$0xff]
      %332 = vst [vmem:[#allocation3] sm:$0xff] 0
      %333 = vst [vmem:[#allocation3 + $0x8] sm:$0xff] 0
      %334 = vst [vmem:[#allocation3 + $0x10] sm:$0xff] 0
      %335 = vst [vmem:[#allocation3 + $0x18] sm:$0xff] 0
      %336 = vst [vmem:[#allocation3 + $0x20] sm:$0xff] 0
      %337 = vst [vmem:[#allocation3 + $0x28] sm:$0xff] 0
      %338 = vst [vmem:[#allocation3 + $0x30] sm:$0xff] 0
      %339 = vst [vmem:[#allocation3 + $0x38] sm:$0xff] 0
      %340 = vst [vmem:[#allocation3 + $0x40] sm:$0xff] 0
      %341 = vst [vmem:[#allocation3 + $0x48] sm:$0xff] 0
      %342 = vst [vmem:[#allocation3 + $0x50] sm:$0xff] 0
      %343 = vst [vmem:[#allocation3 + $0x58] sm:$0xff] 0
      %344 = vst [vmem:[#allocation3 + $0x60] sm:$0xff] 0
      %345 = vst [vmem:[#allocation3 + $0x68] sm:$0xff] 0
      %346 = vst [vmem:[#allocation3 + $0x70] sm:$0xff] 0
      %347 = vst [vmem:[#allocation3 + $0x78] sm:$0xff] 0
      %348 = vst [vmem:[#allocation3 + $0x80] sm:$0xff] 0
      %349 = vst [vmem:[#allocation3 + $0x88] sm:$0xff] 0
      %v350 = vlaneseq
      %v351 = vand.u32 %v350, 127
      %v352 = vadd.s32 %v351, 128
      %v353 = vadd.s32 %v351, 17
      %v354 = vadd.s32 %v352, 17
      %vm355 = vcmp.lt.s32.totalorder %v353, 0
      %v356 = vsub.s32 0, %v353
      %v357 = vsel %vm355, %v356, %v353
      %v358 = vshrl.u32 %v357, 4
      %v359 = vand.u32 %v357, 15
      %v360 = vsub.s32 0, %v359
      %v361 = vsel %vm355, %v360, %v359
      %vm362 = vcmp.lt.s32.totalorder %v354, 0
      %v363 = vsub.s32 0, %v354
      %v364 = vsel %vm362, %v363, %v354
      %v365 = vshrl.u32 %v364, 4
      %v366 = vand.u32 %v364, 15
      %v367 = vsub.s32 0, %v366
      %v368 = vsel %vm362, %v367, %v366
      %vm369 = vcmp.ne.s32.totalorder %v361, 0
      %vm370 = vcmp.ne.s32.totalorder %v368, 0
      %vm371 = vcmp.lt.s32.totalorder %v361, 0
      %vm372 = vcmp.lt.s32.totalorder %v368, 0
      %vm373 = vmand %vm371, %vm369
      %vm374 = vmand %vm372, %vm370
      %v375 = vadd.s32 %v361, 16
      %v376 = vadd.s32 %v368, 16
      %v377 = vsel %vm373, %v375, %v361
      %v378 = vsel %vm374, %v376, %v368
      %v379 = vadd.s32 %v377, 4294967295
      %v380 = vadd.s32 %v378, 4294967295
      %vm381 = vcmp.ge.s32.totalorder %v379, 0
      %vm382 = vcmp.ge.s32.totalorder %v380, 0
      %vm383 = vcmp.lt.s32.totalorder %v379, 16
      %vm384 = vcmp.lt.s32.totalorder %v380, 16
      %vm385 = vmand %vm381, %vm383
      %vm386 = vmand %vm382, %vm384
      %v387 = vsel %vm385, 1, 0
      %v388 = vsel %vm386, 1, 0
      %vm389 = vcmp.eq.s32.totalorder %v387, 1
      %vm390 = vcmp.eq.s32.totalorder %v388, 1
      %vm391 = vmpackc.low %vm390, %vm389
      %v392 = vsel %vm391, 65537, 0
      %v393 = vlaneseq
      %v394 = vshrl.u32 %v393, 7
      %v395 = vsub.s32 0, %v394
      %v396 = vrot.slane %v392, %v395
      %v397 = vlaneseq
      %v398 = vshrl.u32 %v397, 7
      %v399 = vsub.s32 4, %v398
      %v400 = vrot.slane %v392, %v399
      %vm401 = vcmp.ne.s16.totalorder %v396, 0
      %vm402 = vcmp.ne.s16.totalorder %v400, 0
      %v403 = vsel %vm401, %v330, 0
      %v404 = vsel %vm402, %v331, 0
      %407 = vrot.lane.b32.xlu0 %v403, 17
      %v408 = vpop.permute.xlu0 %407
      %409 = vrot.lane.b32.xlu0 %v404, 17
      %v410 = vpop.permute.xlu0 %409
      %vm411 = vcmask 138240
      %v412 = vsel %vm411, %v408, %v410
      %vm415 = vcmask 1047688
      %416 = vst.msk [vmem:[#allocation3] sm:$0xff] %vm415, %v408
      %417 = vst [vmem:[#allocation3 + $0x8] sm:$0xff] %v412
      %420 = vrot.lane.b32.xlu0 %v330, 16
      %v421 = vpop.permute.xlu0 %420
      %422 = vrot.lane.b32.xlu0 %v331, 16
      %v423 = vpop.permute.xlu0 %422
      %vm424 = vcmask 130048
      %v425 = vsel %vm424, %v421, %v423
      %vm428 = vcmask 1047680
      %429 = vst.msk [vmem:[#allocation3 + $0x10] sm:$0xff] %vm428, %v421
      %430 = vst [vmem:[#allocation3 + $0x18] sm:$0xff] %v425
      %v431 = vadd.s32 %v351, 15
      %v432 = vadd.s32 %v352, 15
      %vm433 = vcmp.lt.s32.totalorder %v431, 0
      %v434 = vsub.s32 0, %v431
      %v435 = vsel %vm433, %v434, %v431
      %v436 = vshrl.u32 %v435, 4
      %v437 = vand.u32 %v435, 15
      %v438 = vsub.s32 0, %v437
      %v439 = vsel %vm433, %v438, %v437
      %vm440 = vcmp.lt.s32.totalorder %v432, 0
      %v441 = vsub.s32 0, %v432
      %v442 = vsel %vm440, %v441, %v432
      %v443 = vshrl.u32 %v442, 4
      %v444 = vand.u32 %v442, 15
      %v445 = vsub.s32 0, %v444
      %v446 = vsel %vm440, %v445, %v444
      %vm447 = vcmp.ne.s32.totalorder %v439, 0
      %vm448 = vcmp.ne.s32.totalorder %v446, 0
      %vm449 = vcmp.lt.s32.totalorder %v439, 0
      %vm450 = vcmp.lt.s32.totalorder %v446, 0
      %vm451 = vmand %vm449, %vm447
      %vm452 = vmand %vm450, %vm448
      %v453 = vadd.s32 %v439, 16
      %v454 = vadd.s32 %v446, 16
      %v455 = vsel %vm451, %v453, %v439
      %v456 = vsel %vm452, %v454, %v446
      %v457 = vadd.s32 %v455, 1
      %v458 = vadd.s32 %v456, 1
      %vm459 = vcmp.ge.s32.totalorder %v457, 0
      %vm460 = vcmp.ge.s32.totalorder %v458, 0
      %vm461 = vcmp.lt.s32.totalorder %v457, 16
      %vm462 = vcmp.lt.s32.totalorder %v458, 16
      %vm463 = vmand %vm459, %vm461
      %vm464 = vmand %vm460, %vm462
      %v465 = vsel %vm463, 1, 0
      %v466 = vsel %vm464, 1, 0
      %vm467 = vcmp.eq.s32.totalorder %v465, 1
      %vm468 = vcmp.eq.s32.totalorder %v466, 1
      %vm469 = vmpackc.low %vm468, %vm467
      %v470 = vsel %vm469, 65537, 0
      %v471 = vlaneseq
      %v472 = vshrl.u32 %v471, 7
      %v473 = vsub.s32 0, %v472
      %v474 = vrot.slane %v470, %v473
      %v475 = vlaneseq
      %v476 = vshrl.u32 %v475, 7
      %v477 = vsub.s32 4, %v476
      %v478 = vrot.slane %v470, %v477
      %vm479 = vcmp.ne.s16.totalorder %v474, 0
      %vm480 = vcmp.ne.s16.totalorder %v478, 0
      %v481 = vsel %vm479, %v330, 0
      %v482 = vsel %vm480, %v331, 0
      %485 = vrot.lane.b32.xlu0 %v481, 15
      %v486 = vpop.permute.xlu0 %485
      %487 = vrot.lane.b32.xlu0 %v482, 15
      %v488 = vpop.permute.xlu0 %487
      %vm489 = vcmask 121856
      %v490 = vsel %vm489, %v486, %v488
      %vm493 = vcmask 1047672
      %494 = vst.msk [vmem:[#allocation3 + $0x20] sm:$0xff] %vm493, %v486
      %495 = vst [vmem:[#allocation3 + $0x28] sm:$0xff] %v490
      %v496 = vadd.s32 %v351, 1
      %v497 = vadd.s32 %v352, 1
      %vm498 = vcmp.lt.s32.totalorder %v496, 0
      %v499 = vsub.s32 0, %v496
      %v500 = vsel %vm498, %v499, %v496
      %v501 = vshrl.u32 %v500, 4
      %v502 = vand.u32 %v500, 15
      %v503 = vsub.s32 0, %v502
      %v504 = vsel %vm498, %v503, %v502
      %vm505 = vcmp.lt.s32.totalorder %v497, 0
      %v506 = vsub.s32 0, %v497
      %v507 = vsel %vm505, %v506, %v497
      %v508 = vshrl.u32 %v507, 4
      %v509 = vand.u32 %v507, 15
      %v510 = vsub.s32 0, %v509
      %v511 = vsel %vm505, %v510, %v509
      %vm512 = vcmp.ne.s32.totalorder %v504, 0
      %vm513 = vcmp.ne.s32.totalorder %v511, 0
      %vm514 = vcmp.lt.s32.totalorder %v504, 0
      %vm515 = vcmp.lt.s32.totalorder %v511, 0
      %vm516 = vmand %vm514, %vm512
      %vm517 = vmand %vm515, %vm513
      %v518 = vadd.s32 %v504, 16
      %v519 = vadd.s32 %v511, 16
      %v520 = vsel %vm516, %v518, %v504
      %v521 = vsel %vm517, %v519, %v511
      %v522 = vadd.s32 %v520, 4294967295
      %v523 = vadd.s32 %v521, 4294967295
      %vm524 = vcmp.ge.s32.totalorder %v522, 0
      %vm525 = vcmp.ge.s32.totalorder %v523, 0
      %vm526 = vcmp.lt.s32.totalorder %v522, 16
      %vm527 = vcmp.lt.s32.totalorder %v523, 16
      %vm528 = vmand %vm524, %vm526
      %vm529 = vmand %vm525, %vm527
      %v530 = vsel %vm528, 1, 0
      %v531 = vsel %vm529, 1, 0
      %vm532 = vcmp.eq.s32.totalorder %v530, 1
      %vm533 = vcmp.eq.s32.totalorder %v531, 1
      %vm534 = vmpackc.low %vm533, %vm532
      %v535 = vsel %vm534, 65537, 0
      %v536 = vlaneseq
      %v537 = vshrl.u32 %v536, 7
      %v538 = vsub.s32 0, %v537
      %v539 = vrot.slane %v535, %v538
      %v540 = vlaneseq
      %v541 = vshrl.u32 %v540, 7
      %v542 = vsub.s32 4, %v541
      %v543 = vrot.slane %v535, %v542
      %vm544 = vcmp.ne.s16.totalorder %v539, 0
      %vm545 = vcmp.ne.s16.totalorder %v543, 0
      %v546 = vsel %vm544, %v330, 0
      %v547 = vsel %vm545, %v331, 0
      %550 = vrot.lane.b32.xlu0 %v546, 1
      %v551 = vpop.permute.xlu0 %550
      %552 = vrot.lane.b32.xlu0 %v547, 1
      %v553 = vpop.permute.xlu0 %552
      %vm554 = vcmask 7168
      %v555 = vsel %vm554, %v551, %v553
      %vm558 = vcmask 1047560
      %559 = vst.msk [vmem:[#allocation3 + $0x30] sm:$0xff] %vm558, %v551
      %560 = vst [vmem:[#allocation3 + $0x38] sm:$0xff] %v555
      %561 = vst [vmem:[#allocation3 + $0x40] sm:$0xff] %v330
      %562 = vst [vmem:[#allocation3 + $0x48] sm:$0xff] %v331
      %vm563 = vcmp.lt.s32.totalorder %v351, 0
      %v564 = vsub.s32 0, %v351
      %v565 = vsel %vm563, %v564, %v351
      %v566 = vshrl.u32 %v565, 4
      %v567 = vand.u32 %v565, 15
      %v568 = vsub.s32 0, %v567
      %v569 = vsel %vm563, %v568, %v567
      %vm570 = vcmp.lt.s32.totalorder %v352, 0
      %v571 = vsub.s32 0, %v352
      %v572 = vsel %vm570, %v571, %v352
      %v573 = vshrl.u32 %v572, 4
      %v574 = vand.u32 %v572, 15
      %v575 = vsub.s32 0, %v574
      %v576 = vsel %vm570, %v575, %v574
      %vm577 = vcmp.ne.s32.totalorder %v569, 0
      %vm578 = vcmp.ne.s32.totalorder %v576, 0
      %vm579 = vcmp.lt.s32.totalorder %v569, 0
      %vm580 = vcmp.lt.s32.totalorder %v576, 0
      %vm581 = vmand %vm579, %vm577
      %vm582 = vmand %vm580, %vm578
      %v583 = vadd.s32 %v569, 16
      %v584 = vadd.s32 %v576, 16
      %v585 = vsel %vm581, %v583, %v569
      %v586 = vsel %vm582, %v584, %v576
      %v587 = vadd.s32 %v585, 1
      %v588 = vadd.s32 %v586, 1
      %vm589 = vcmp.ge.s32.totalorder %v587, 0
      %vm590 = vcmp.ge.s32.totalorder %v588, 0
      %vm591 = vcmp.lt.s32.totalorder %v587, 16
      %vm592 = vcmp.lt.s32.totalorder %v588, 16
      %vm593 = vmand %vm589, %vm591
      %vm594 = vmand %vm590, %vm592
      %v595 = vsel %vm593, 1, 0
      %v596 = vsel %vm594, 1, 0
      %vm597 = vcmp.eq.s32.totalorder %v595, 1
      %vm598 = vcmp.eq.s32.totalorder %v596, 1
      %vm599 = vmpackc.low %vm598, %vm597
      %v600 = vsel %vm599, 65537, 0
      %v601 = vlaneseq
      %v602 = vshrl.u32 %v601, 7
      %v603 = vsub.s32 0, %v602
      %v604 = vrot.slane %v600, %v603
      %v605 = vlaneseq
      %v606 = vshrl.u32 %v605, 7
      %v607 = vsub.s32 4, %v606
      %v608 = vrot.slane %v600, %v607
      %609 = vrot.lane.b32.xlu0 %v604, 1
      %v610 = vpop.permute.xlu0 %609
      %611 = vrot.lane.b32.xlu0 %v608, 1
      %v612 = vpop.permute.xlu0 %611
      %v613 = vsel %vm554, %v610, %v612
      %vm614 = vcmp.ne.s16.totalorder %v610, 0
      %vm615 = vcmp.ne.s16.totalorder %v613, 0
      %v616 = vsel %vm614, %v330, 0
      %v617 = vsel %vm615, %v331, 0
      %620 = vrot.lane.b32.xlu0 %v616, 127
      %v621 = vpop.permute.xlu0 %620
      %622 = vrot.lane.b32.xlu0 %v617, 127
      %v623 = vpop.permute.xlu0 %622
      %vm624 = vcmask 1039360
      %v625 = vsel %vm624, %v621, %v623
      %628 = vst [vmem:[#allocation3 + $0x50] sm:$0xff] %v625
      %vm629 = vcmask 1039360
      %630 = vst.msk [vmem:[#allocation3 + $0x58] sm:$0xff] %vm629, %v623
      %v631 = vadd.s32 %v585, 4294967295
      %v632 = vadd.s32 %v586, 4294967295
      %vm633 = vcmp.ge.s32.totalorder %v631, 0
      %vm634 = vcmp.ge.s32.totalorder %v632, 0
      %vm635 = vcmp.lt.s32.totalorder %v631, 16
      %vm636 = vcmp.lt.s32.totalorder %v632, 16
      %vm637 = vmand %vm633, %vm635
      %vm638 = vmand %vm634, %vm636
      %v639 = vsel %vm637, 1, 0
      %v640 = vsel %vm638, 1, 0
      %vm641 = vcmp.eq.s32.totalorder %v639, 1
      %vm642 = vcmp.eq.s32.totalorder %v640, 1
      %vm643 = vmpackc.low %vm642, %vm641
      %v644 = vsel %vm643, 65537, 0
      %v645 = vlaneseq
      %v646 = vshrl.u32 %v645, 7
      %v647 = vsub.s32 0, %v646
      %v648 = vrot.slane %v644, %v647
      %v649 = vlaneseq
      %v650 = vshrl.u32 %v649, 7
      %v651 = vsub.s32 4, %v650
      %v652 = vrot.slane %v644, %v651
      %653 = vrot.lane.b32.xlu0 %v648, 15
      %v654 = vpop.permute.xlu0 %653
      %655 = vrot.lane.b32.xlu0 %v652, 15
      %v656 = vpop.permute.xlu0 %655
      %v657 = vsel %vm489, %v654, %v656
      %vm658 = vcmp.ne.s16.totalorder %v654, 0
      %vm659 = vcmp.ne.s16.totalorder %v657, 0
      %v660 = vsel %vm658, %v330, 0
      %v661 = vsel %vm659, %v331, 0
      %664 = vrot.lane.b32.xlu0 %v660, 113
      %v665 = vpop.permute.xlu0 %664
      %666 = vrot.lane.b32.xlu0 %v661, 113
      %v667 = vpop.permute.xlu0 %666
      %vm668 = vcmask 924672
      %v669 = vsel %vm668, %v665, %v667
      %672 = vst [vmem:[#allocation3 + $0x60] sm:$0xff] %v669
      %vm673 = vcmask 924672
      %674 = vst.msk [vmem:[#allocation3 + $0x68] sm:$0xff] %vm673, %v667
      %675 = vrot.lane.b32.xlu0 %v330, 112
      %v676 = vpop.permute.xlu0 %675
      %677 = vrot.lane.b32.xlu0 %v331, 112
      %v678 = vpop.permute.xlu0 %677
      %vm679 = vcmask 916480
      %v680 = vsel %vm679, %v676, %v678
      %683 = vst [vmem:[#allocation3 + $0x70] sm:$0xff] %v680
      %vm684 = vcmask 916480
      %685 = vst.msk [vmem:[#allocation3 + $0x78] sm:$0xff] %vm684, %v678
      %686 = vrot.lane.b32.xlu0 %v604, 17
      %v687 = vpop.permute.xlu0 %686
      %688 = vrot.lane.b32.xlu0 %v608, 17
      %v689 = vpop.permute.xlu0 %688
      %v690 = vsel %vm411, %v687, %v689
      %vm691 = vcmp.ne.s16.totalorder %v687, 0
      %vm692 = vcmp.ne.s16.totalorder %v690, 0
      %v693 = vsel %vm691, %v330, 0
      %v694 = vsel %vm692, %v331, 0
      %697 = vrot.lane.b32.xlu0 %v693, 111
      %v698 = vpop.permute.xlu0 %697
      %699 = vrot.lane.b32.xlu0 %v694, 111
      %v700 = vpop.permute.xlu0 %699
      %vm701 = vcmask 908288
      %v702 = vsel %vm701, %v698, %v700
      %705 = vst [vmem:[#allocation3 + $0x80] sm:$0xff] %v702
      %vm706 = vcmask 908288
      %707 = vst.msk [vmem:[#allocation3 + $0x88] sm:$0xff] %vm706, %v700
      %v708 = vld [vmem:[%s3] sm:$0xff]
      %v709 = vld [vmem:[%s3 + $0x8] sm:$0xff]
      %v710 = vld [vmem:[%s3 + $0x10] sm:$0xff]
      %v711 = vld [vmem:[%s3 + $0x18] sm:$0xff]
      %v712 = vld [vmem:[#allocation3] sm:$0xff]
      %v713 = vld [vmem:[#allocation3 + $0x8] sm:$0xff]
      %v714 = vld [vmem:[#allocation3 + $0x10] sm:$0xff]
      %v715 = vld [vmem:[#allocation3 + $0x18] sm:$0xff]
      %v716 = vld [vmem:[#allocation3 + $0x20] sm:$0xff]
      %v717 = vld [vmem:[#allocation3 + $0x28] sm:$0xff]
      %v718 = vld [vmem:[#allocation3 + $0x30] sm:$0xff]
      %v719 = vld [vmem:[#allocation3 + $0x38] sm:$0xff]
      %v720 = vld [vmem:[#allocation3 + $0x40] sm:$0xff]
      %v721 = vld [vmem:[#allocation3 + $0x48] sm:$0xff]
      %v722 = vld [vmem:[#allocation3 + $0x50] sm:$0xff]
      %v723 = vld [vmem:[#allocation3 + $0x58] sm:$0xff]
      %v724 = vld [vmem:[#allocation3 + $0x60] sm:$0xff]
      %v725 = vld [vmem:[#allocation3 + $0x68] sm:$0xff]
      %v726 = vld [vmem:[#allocation3 + $0x70] sm:$0xff]
      %v727 = vld [vmem:[#allocation3 + $0x78] sm:$0xff]
      %v728 = vld [vmem:[#allocation3 + $0x80] sm:$0xff]
      %v729 = vld [vmem:[#allocation3 + $0x88] sm:$0xff]
      %v730 = vld [vmem:[%s4] sm:$0xff]
      %v731 = vld [vmem:[%s4 + $0x8] sm:$0xff]
      %v732 = vld [vmem:[%s4 + $0x10] sm:$0xff]
      %v733 = vld [vmem:[%s4 + $0x18] sm:$0xff]
      %735 = vset.pattern.permute.xlu0 0
      %736 = vperm.xlu0 %735, %v730
      %v737 = vpop.permute.xlu0 %736
      %740 = vset.pattern.permute.xlu0 0
      %741 = vperm.xlu0 %740, %v731
      %v742 = vpop.permute.xlu0 %741
      %745 = vset.pattern.permute.xlu0 0
      %746 = vperm.xlu0 %745, %v732
      %v747 = vpop.permute.xlu0 %746
      %750 = vset.pattern.permute.xlu0 0
      %751 = vperm.xlu0 %750, %v733
      %v752 = vpop.permute.xlu0 %751
      %v758 = vunpack.c.l.b16 %v708
      %v759 = vunpack.c.h.b16 %v708
      %v760 = vunpack.c.l.b16 %v709
      %v761 = vunpack.c.h.b16 %v709
      %v762 = vunpack.c.l.b16 %v710
      %v763 = vunpack.c.h.b16 %v710
      %v764 = vunpack.c.l.b16 %v711
      %v765 = vunpack.c.h.b16 %v711
      %v766 = vpack.c.b16 %v760, %v758
      %v767 = vpack.c.b16 %v761, %v759
      %v768 = vpack.c.b16 %v764, %v762
      %v769 = vpack.c.b16 %v765, %v763
      %vm772 = vcmask 130048
      %v774 = vsel %vm772, %v767, 0
      %v777 = vsel %vm772, %v769, 0
      %779 = vmatprep.subr.bf16.mxu0 %v713
      %780 = vmatpush1.bf16.msra.mxu0 %v712
      %781 = vmatprep.subr.bf16.mxu0 %v715
      %782 = vmatpush1.bf16.msra.mxu0 %v714
      %783 = vmatprep.subr.bf16.mxu0 %v717
      %784 = vmatpush1.bf16.msra.mxu0 %v716
      %785 = vmatprep.subr.bf16.mxu0 %v719
      %786 = vmatpush1.bf16.msra.mxu0 %v718
      %787 = vmatprep.subr.bf16.mxu0 %v721
      %788 = vmatpush1.bf16.msra.mxu0 %v720
      %789 = vmatprep.subr.bf16.mxu0 %v723
      %790 = vmatpush1.bf16.msra.mxu0 %v722
      %791 = vmatprep.subr.bf16.mxu0 %v725
      %792 = vmatpush1.bf16.msra.mxu0 %v724
      %793 = vmatprep.subr.bf16.mxu0 %v727
      %794 = vmatpush1.bf16.msra.mxu0 %v726
      %795 = vmatprep.subr.bf16.mxu0 %v729
      %796 = vmatpush1.bf16.msra.mxu0 %v728
      %797 = vmatprep.subr.bf16.mxu0 0
      %798 = vmatpush1.bf16.msra.mxu0 0
      %799 = vmatprep.subr.bf16.mxu0 0
      %800 = vmatpush1.bf16.msra.mxu0 0
      %801 = vmatprep.subr.bf16.mxu0 0
      %802 = vmatpush1.bf16.msra.mxu0 0
      %803 = vmatprep.subr.bf16.mxu0 0
      %804 = vmatpush1.bf16.msra.mxu0 0
      %805 = vmatprep.subr.bf16.mxu0 0
      %806 = vmatpush1.bf16.msra.mxu0 0
      %807 = vmatprep.subr.bf16.mxu0 0
      %808 = vmatpush1.bf16.msra.mxu0 0
      %809 = vmatprep.subr.bf16.mxu0 0
      %810 = vmatpush1.bf16.msra.mxu0 0
      %811 = vmatprep.mubr.bf16.mxu0 %v774
      %812 = vmatmul.mubr.bf16.gmra.mrb[0].mxu0 %v766
      %v813 = vpop.f32.mrb[0].mxu0
      %v814 = vadd.f32 %v737, %v813
      %v815 = vpop.f32.mrb[0].mxu0
      %v816 = vadd.f32 %v737, %v815
      %v817 = vpop.f32.mrb[0].mxu0
      %v818 = vadd.f32 %v742, %v817
      %v819 = vpop.f32.mrb[0].mxu0
      %v820 = vadd.f32 %v742, %v819
      %821 = vmatprep.mubr.bf16.mxu0 %v777
      %822 = vmatmul.mubr.bf16.gmra.mrb[0].mxu0 %v768
      %v823 = vpop.f32.mrb[0].mxu0
      %v824 = vadd.f32 %v747, %v823
      %v825 = vpop.f32.mrb[0].mxu0
      %v826 = vadd.f32 %v747, %v825
      %v827 = vpop.f32.mrb[0].mxu0
      %v828 = vadd.f32 %v752, %v827
      %v829 = vpop.f32.mrb[0].mxu0
      %v830 = vadd.f32 %v752, %v829
      %831 = vdwg.mxu0
      %v832 = vxor.u32 %v814, 2147483648
      %v833 = vxor.u32 %v816, 2147483648
      %v834 = vmul.f32 %v832, 1.442695
      %v835 = vpow.pop %v834
      %v836 = vmul.f32 %v833, 1.442695
      %v837 = vpow.pop %v836
      %v838 = vadd.f32 %v835, 1.0
      %v839 = vadd.f32 %v837, 1.0
      %v840 = vrcp.pop %v838
      %v841 = vmul.f32 1.0, %v840
      %v842 = vrcp.pop %v839
      %v843 = vmul.f32 1.0, %v842
      %v844 = vxor.u32 %v818, 2147483648
      %v845 = vxor.u32 %v820, 2147483648
      %v846 = vmul.f32 %v844, 1.442695
      %v847 = vpow.pop %v846
      %v848 = vmul.f32 %v845, 1.442695
      %v849 = vpow.pop %v848
      %v850 = vadd.f32 %v847, 1.0
      %v851 = vadd.f32 %v849, 1.0
      %v852 = vrcp.pop %v850
      %v853 = vmul.f32 1.0, %v852
      %v854 = vrcp.pop %v851
      %v855 = vmul.f32 1.0, %v854
      %v856 = vxor.u32 %v824, 2147483648
      %v857 = vxor.u32 %v826, 2147483648
      %v858 = vmul.f32 %v856, 1.442695
      %v859 = vpow.pop %v858
      %v860 = vmul.f32 %v857, 1.442695
      %v861 = vpow.pop %v860
      %v862 = vadd.f32 %v859, 1.0
      %v863 = vadd.f32 %v861, 1.0
      %v864 = vrcp.pop %v862
      %v865 = vmul.f32 1.0, %v864
      %v866 = vrcp.pop %v863
      %v867 = vmul.f32 1.0, %v866
      %v868 = vtanh.pop %v828
      %v869 = vtanh.pop %v830
      %v870 = vld [vmem:[%s294] sm:$0xff]
      %v871 = vld [vmem:[%s294 + $0x8] sm:$0xff]
      %v872 = vmul.f32 %v853, %v870
      %v873 = vmul.f32 %v855, %v871
      %v874 = vmul.f32 %v841, %v868
      %v875 = vmul.f32 %v843, %v869
      %v876 = vadd.f32 %v872, %v874
      %v877 = vadd.f32 %v873, %v875
      %v878 = vtanh.pop %v876
      %v879 = vtanh.pop %v877
      %v880 = vmul.f32 %v865, %v878
      %v881 = vmul.f32 %v867, %v879
      %882 = vst [vmem:[%s299] sm:$0xff] %v880
      %883 = vst [vmem:[%s299 + $0x8] sm:$0xff] %v881
      %884 = vst [vmem:[%s304] sm:$0xff] %v876
      %885 = vst [vmem:[%s304 + $0x8] sm:$0xff] %v877
      %p886 = scmp.lt.s32.totalorder %s18, 1
      %s887 = scalar_select %p886, %s18, 1
      %s888 = smul.addr %s887, 2
      %s889 = smul.addr %s888, 8
      %s890 = scalar_lea.vmem %s5, %s889
      %p891 = scmp.lt.s32.totalorder %s18, 1
      %s892 = scalar_select %p891, %s18, 1
      %s893 = smul.addr %s892, 2
      %s894 = smul.addr %s893, 8
      %s895 = scalar_lea.vmem %s6, %s894
      // Predicated region
      $region41: #{rnncell_forward.1} parent=39 // pred_check
        %p896 = pneg %p156
      $region42: #{rnncell_forward.1} parent=39 // pred_check_branch
        %898 = sbr.rel (%p896) target = $region44
      $region43: #{rnncell_forward.1} parent=39 // pred_region
        _
      $region44: #{rnncell_forward.1} parent=39 // pred_fallthru
        _
      // Predicated region
      $region45: #{rnncell_forward.1} parent=39 // pred_check
        %p899 = pneg %p182
      $region46: #{rnncell_forward.1} parent=39 // pred_check_branch
        %901 = sbr.rel (%p899) target = $region48
      $region47: #{rnncell_forward.1} parent=39 // pred_region
        _
      $region48: #{rnncell_forward.1} parent=39 // pred_fallthru
        _
    $region40: #{rnncell_forward.1} parent=5 // pred_fallthru
      _
    %p902 = scmp.le.s32.totalorder 2, %s13
    // Predicated region
    $region49: #{rnncell_forward.1} parent=5 // pred_check
      %p903 = pneg %p902
    $region50: #{rnncell_forward.1} parent=5 // pred_check_branch
      %905 = sbr.rel (%p903) target = $region52
    $region51: #{rnncell_forward.1} parent=5 // pred_region
      %s906 = ssub.s32 %s13, 2
      // Predicated region
      $region53: #{rnncell_forward.1} parent=51 // pred_check
        %p907 = pneg %p162
      $region54: #{rnncell_forward.1} parent=51 // pred_check_branch
        %909 = sbr.rel (%p907) target = $region56
      $region55: #{rnncell_forward.1} parent=51 // pred_region
        %p910 = scmp.lt.s32.totalorder %s19, 1
        %s911 = scalar_select %p910, %s19, 1
        %s912 = smul.addr %s911, 2
        %s913 = smul.addr %s912, 8
        %s914 = scalar_lea.vmem %s5, %s913
      $region56: #{rnncell_forward.1} parent=51 // pred_fallthru
        _
      // Predicated region
      $region57: #{rnncell_forward.1} parent=51 // pred_check
        %p915 = pneg %p188
      $region58: #{rnncell_forward.1} parent=51 // pred_check_branch
        %917 = sbr.rel (%p915) target = $region60
      $region59: #{rnncell_forward.1} parent=51 // pred_region
        %p918 = scmp.lt.s32.totalorder %s19, 1
        %s919 = scalar_select %p918, %s19, 1
        %s920 = smul.addr %s919, 2
        %s921 = smul.addr %s920, 8
        %s922 = scalar_lea.vmem %s6, %s921
      $region60: #{rnncell_forward.1} parent=51 // pred_fallthru
        _
    $region52: #{rnncell_forward.1} parent=5 // pred_fallthru
      _
  $region6: #{rnncell_forward.1} parent=0 // loop_footer
    %s17 = sadd.s32 1, %s13
  $region7: #{rnncell_forward.1} parent=0 // loop_footer_branch
    %12 = sbr.rel target = $region3
  $region8: #{rnncell_forward.1} parent=0 // loop_exit
    _

</llo_original>
